<compile_context>
chip_gen: v5e
topology: v5e:2x2
jax: 0.10.0
libtpu: 0.0.40
codegen_flags: <defaults>
</compile_context>

<pallas_src>
import functools
import math

import jax
import jax.numpy as jnp
from jax import lax
from jax.experimental import pallas as pl
from jax.experimental.pallas import tpu as pltpu

# ------------------------- model sizes (scaled-down, consistent) -------------------------
B = 2            # batch
C = 4            # in_channels == out_channels == embed_dim (forced by residual + LayerNorm)
H = W = 16       # spatial
HW = H * W
N = B * HW       # batch packed along lanes
LAT = 16         # latent_dim of wavelength encoder (orig default 64, scaled down)
NHEAD = 4
HD = LAT // NHEAD
FF = 32          # transformer dim_feedforward (orig default 2048, scaled down)
EMB = C          # ModalityAwareAggregation embed_dim
T = 8            # number of text rows
DTXT = 32        # text feature dim (orig 768, scaled down; text_proj: DTXT -> EMB)
K = 3            # conv kernel size
EPS = 1e-5       # LayerNorm eps (PyTorch default)

assert (W & (W - 1)) == 0 and (HW & (HW - 1)) == 0, "bitwise index math needs powers of two"
LOG2HW = HW.bit_length() - 1


def _dot(a, b):
    return jnp.dot(a, b, preferred_element_type=jnp.float32)


# =========================================================================================
# Pallas kernel: dynamic conv + base conv + residual + pool + FiLM + logits, one invocation.
# Everything stays in VMEM / vregs; only the [B, T] logits go back to HBM.
# =========================================================================================
def geochat_kernel(dynk_ref, basek_ref, baseb_ref, gamma_ref, beta_ref,
                   tf_ref, x_ref, logits_ref):
    x = x_ref[...]                                        # [C, N], batch packed along lanes

    # ---- per-tap border masks, built once and reused by both convs ----
    lane = lax.broadcasted_iota(jnp.int32, (1, N), 1)
    fi = jnp.bitwise_and(lane, HW - 1)                    # flat index within its own image
    col = jnp.bitwise_and(lane, W - 1)                    # column within its own image
    top = fi >= W                                         # tap row above exists
    bot = fi < (H - 1) * W                                # tap row below exists
    left = col >= 1                                       # tap column to the left exists
    right = col <= W - 2                                  # tap column to the right exists
    masks = {}
    for dy in range(K):
        for dx in range(K):
            conds = []
            if dy == 0:
                conds.append(top)
            if dy == 2:
                conds.append(bot)
            if dx == 0:
                conds.append(left)
            if dx == 2:
                conds.append(right)
            masks[(dy, dx)] = (functools.reduce(jnp.logical_and, conds) if conds else None)

    def im2col(inp):
        """Stack the 9 shifted+masked taps into [9*C, N] (tap-major rows)."""
        taps = []
        for dy in range(K):
            for dx in range(K):
                s = (dy - 1) * W + (dx - 1)               # flat shift of this tap
                if s == 0:
                    tap = inp
                else:
                    # tap[c, p] = inp[c, (p + s) mod N] (jnp.roll convention);
                    # masks zero every read that would cross an image border / wrap.
                    tap = pltpu.roll(inp, shift=(-s) % N, axis=1)
                    tap = jnp.where(masks[(dy, dx)], tap, 0.0)
                taps.append(tap)
        return jnp.concatenate(taps, axis=0)              # [9*C, N]

    # ---- dynamic conv (wavelength-generated kernel) + base conv + residual ----
    dyn_out = _dot(dynk_ref[...], im2col(x))                              # [C, N]
    base_out = _dot(basek_ref[...], im2col(dyn_out)) + baseb_ref[...]     # [C, N]
    total = dyn_out + base_out          # reference: x = dyn_conv(x); return x + base_conv(x)

    # ---- per-image spatial mean pool via one matmul: P[b, p] = 1/HW iff p in image b ----
    img = jnp.right_shift(lane, LOG2HW)                                   # [1, N]
    rows = lax.broadcasted_iota(jnp.int32, (B, N), 0)                     # [B, N]
    P = jnp.where(rows == img, 1.0 / HW, 0.0)
    pooled = lax.dot_general(P, total, (((1,), (1,)), ((), ())),
                             preferred_element_type=jnp.float32)          # [B, C]

    # ---- ModalityAwareAggregation: LayerNorm (no affine) + FiLM with gamma/beta ----
    mu = jnp.mean(pooled, axis=-1, keepdims=True)
    var = jnp.mean((pooled - mu) ** 2, axis=-1, keepdims=True)
    vf = (pooled - mu) * lax.rsqrt(var + EPS) * gamma_ref[...] + beta_ref[...]   # [B, EMB]

    # ---- logits = visual_feat @ text_feat.T, single [B, T] store ----
    logits_ref[...] = lax.dot_general(vf, tf_ref[...], (((1,), (1,)), ((), ())),
                                      preferred_element_type=jnp.float32)        # [B, T]


# ------------------------------------ host-side (XLA) ------------------------------------
def _ln(x, g, b):
    mu = jnp.mean(x, axis=-1, keepdims=True)
    var = jnp.mean((x - mu) ** 2, axis=-1, keepdims=True)
    return (x - mu) * lax.rsqrt(var + EPS) * g + b


def _encoder_host(wl, p):
    """Batch-invariant wavelength encoder: Linear(1,LAT) -> GELU ->
    TransformerEncoderLayer (post-LN, ReLU FFN, eval mode) -> Linear(LAT, 9*C)."""
    h = wl @ p['w1'] + p['b1']                          # [C, LAT]
    h = jax.nn.gelu(h, approximate=False)               # exact erf, like nn.GELU default
    q = h @ p['wq'] + p['bq']
    k = h @ p['wk'] + p['bk']
    v = h @ p['wv'] + p['bv']
    qh = q.reshape(C, NHEAD, HD).transpose(1, 0, 2)
    kh = k.reshape(C, NHEAD, HD).transpose(1, 0, 2)
    vh = v.reshape(C, NHEAD, HD).transpose(1, 0, 2)
    sc = jnp.einsum('hqd,hkd->hqk', qh, kh) / math.sqrt(HD)
    pr = jax.nn.softmax(sc, axis=-1)
    att = jnp.einsum('hqk,hkd->hqd', pr, vh).transpose(1, 0, 2).reshape(C, LAT)
    att = att @ p['wo'] + p['bo']
    h = _ln(h + att, p['ln1g'], p['ln1b'])
    ff = jax.nn.relu(h @ p['wf1'] + p['bf1']) @ p['wf2'] + p['bf2']
    h = _ln(h + ff, p['ln2g'], p['ln2b'])
    # TODO(synk): reference rearrange 'c (k ch) -> ch c 3 3' with groups=C is
    # shape-inconsistent; interpreted as a dense (groups=1) 3x3 conv weight, tap-major cols.
    return h @ p['wkp'] + p['bkp']                      # [C, 9*C]


def _prompt_host(wl, p):
    # TODO(synk): prompt_generator's first layer is Linear(embed_dim, .) but its input
    # wavelengths.mean(dim=0) is a scalar; re-dimensioned to Linear(1, EMB//2).
    wmean = jnp.mean(wl)
    p1 = jax.nn.relu(wmean * p['wp1'] + p['bp1'])       # [1, EMB//2]
    prompt = p1 @ p['wp2'] + p['bp2']                   # [1, EMB]
    gamma = prompt @ p['wg'] + p['bg']                  # [1, EMB]
    beta = prompt @ p['wb'] + p['bb']                   # [1, EMB]
    return gamma, beta


@jax.jit
def geochat_forward(image, text, wavelengths, p):
    # Batch-invariant encoder / prompt / text projection hoisted out of the kernel.
    dynk = _encoder_host(wavelengths, p)                # [C, 9*C]
    gamma, beta = _prompt_host(wavelengths, p)          # [1, EMB] each
    tf = text @ p['wt'] + p['bt']                       # [T, EMB]

    # Batch packed along lanes: x_packed[c, b*HW + s] = image[b, c, s]
    x_packed = jnp.transpose(image.reshape(B, C, HW), (1, 0, 2)).reshape(C, N)

    return pl.pallas_call(
        geochat_kernel,
        out_shape=jax.ShapeDtypeStruct((B, T), jnp.float32),
    )(dynk, p['base_w'], p['base_b'], gamma, beta, tf, x_packed)   # [B, T]


def init_params():
    keys = iter(jax.random.split(jax.random.PRNGKey(42), 64))

    def rnd(shape, scale=0.2):
        return (scale * jax.random.normal(next(keys), shape)).astype(jnp.float32)

    p = {}
    # wavelength_encoder: Linear(1, LAT) -> GELU -> TransformerEncoderLayer -> Linear(LAT, 9*C)
    p['w1'], p['b1'] = rnd((1, LAT)), rnd((1, LAT), 0.05)
    for nm in ('q', 'k', 'v', 'o'):
        p['w' + nm] = rnd((LAT, LAT))
        p['b' + nm] = rnd((1, LAT), 0.05)
    p['ln1g'], p['ln1b'] = jnp.ones((1, LAT), jnp.float32), jnp.zeros((1, LAT), jnp.float32)
    p['wf1'], p['bf1'] = rnd((LAT, FF)), rnd((1, FF), 0.05)
    p['wf2'], p['bf2'] = rnd((FF, LAT)), rnd((1, LAT), 0.05)
    p['ln2g'], p['ln2b'] = jnp.ones((1, LAT), jnp.float32), jnp.zeros((1, LAT), jnp.float32)
    # kernel-generator output / base conv weights stored tap-major: column = tap*C + c_in
    p['wkp'], p['bkp'] = rnd((LAT, 9 * C), 0.1), rnd((1, 9 * C), 0.02)
    p['base_w'], p['base_b'] = rnd((C, 9 * C), 0.1), rnd((C, 1), 0.05)
    # ModalityAwareAggregation
    p['wp1'], p['bp1'] = rnd((1, EMB // 2)), rnd((1, EMB // 2), 0.05)
    p['wp2'], p['bp2'] = rnd((EMB // 2, EMB)), rnd((1, EMB), 0.05)
    p['wg'], p['bg'] = rnd((EMB, EMB)), jnp.ones((1, EMB), jnp.float32)
    p['wb'], p['bb'] = rnd((EMB, EMB)), jnp.zeros((1, EMB), jnp.float32)
    # text_proj: Linear(DTXT, EMB)
    p['wt'], p['bt'] = rnd((DTXT, EMB), 0.1), rnd((1, EMB), 0.05)
    return p


if __name__ == "__main__":
    key = jax.random.PRNGKey(0)
    k_img, k_wl, k_txt = jax.random.split(key, 3)
    image = jax.random.normal(k_img, (B, C, H, W), jnp.float32)
    wavelengths = jax.random.uniform(k_wl, (C, 1), jnp.float32, 0.4, 2.5)
    text = jax.random.normal(k_txt, (T, DTXT), jnp.float32)

    params = init_params()
    logits = geochat_forward(image, text, wavelengths, params)
    logits = jax.block_until_ready(logits)

    assert logits.shape == (B, T), logits.shape
    assert bool(jnp.all(jnp.isfinite(logits)))
    print("KERNEL_OK")
</pallas_src>

<mosaic_0001>
module attributes {stable_mosaic.version = 11 : i64} {
  func.func @geochat_kernel(%arg0: memref<4x36xf32, #tpu.memory_space<vmem>>, %arg1: memref<4x36xf32, #tpu.memory_space<vmem>>, %arg2: memref<4x1xf32, #tpu.memory_space<vmem>>, %arg3: memref<1x4xf32, #tpu.memory_space<vmem>>, %arg4: memref<1x4xf32, #tpu.memory_space<vmem>>, %arg5: memref<8x4xf32, #tpu.memory_space<vmem>>, %arg6: memref<4x512xf32, #tpu.memory_space<vmem>>, %arg7: memref<2x8xf32, #tpu.memory_space<vmem>>) attributes {dimension_semantics = [], scalar_prefetch = 0 : i64, scratch_operands = 0 : i64, tpu.core_type = #tpu.core_type<tc>} {
    %c0 = arith.constant 0 : index
    %c0_0 = arith.constant 0 : index
    %0 = vector.load %arg6[%c0, %c0_0] : memref<4x512xf32, #tpu.memory_space<vmem>>, vector<4x512xf32>
    %1 = tpu.iota {dimensions = array<i32: 1>} : vector<1x512xi32>
    %c255_i32 = arith.constant 255 : i32
    %2 = vector.broadcast %c255_i32 : i32 to vector<1x512xi32>
    %3 = arith.andi %1, %2 : vector<1x512xi32>
    %c15_i32 = arith.constant 15 : i32
    %4 = vector.broadcast %c15_i32 : i32 to vector<1x512xi32>
    %5 = arith.andi %1, %4 : vector<1x512xi32>
    %c16_i32 = arith.constant 16 : i32
    %6 = vector.broadcast %c16_i32 : i32 to vector<1x512xi32>
    %7 = arith.cmpi sge, %3, %6 : vector<1x512xi32>
    %c240_i32 = arith.constant 240 : i32
    %8 = vector.broadcast %c240_i32 : i32 to vector<1x512xi32>
    %9 = arith.cmpi slt, %3, %8 : vector<1x512xi32>
    %c1_i32 = arith.constant 1 : i32
    %10 = vector.broadcast %c1_i32 : i32 to vector<1x512xi32>
    %11 = arith.cmpi sge, %5, %10 : vector<1x512xi32>
    %c14_i32 = arith.constant 14 : i32
    %12 = vector.broadcast %c14_i32 : i32 to vector<1x512xi32>
    %13 = arith.cmpi sle, %5, %12 : vector<1x512xi32>
    %14 = arith.andi %7, %11 : vector<1x512xi1>
    %15 = arith.andi %7, %13 : vector<1x512xi1>
    %16 = arith.andi %9, %11 : vector<1x512xi1>
    %17 = arith.andi %9, %13 : vector<1x512xi1>
    %c0_1 = arith.constant 0 : index
    %c0_2 = arith.constant 0 : index
    %18 = vector.load %arg0[%c0_1, %c0_2] : memref<4x36xf32, #tpu.memory_space<vmem>>, vector<4x36xf32>
    %c17_i32 = arith.constant 17 : i32
    %19 = tpu.dynamic_rotate %0 by %c17_i32 dim 1 : vector<4x512xf32>, i32 -> vector<4x512xf32>
    %cst = arith.constant 0.000000e+00 : f32
    %20 = vector.shape_cast %14 : vector<1x512xi1> to vector<1x512xi1>
    %21 = vector.broadcast %20 : vector<1x512xi1> to vector<4x512xi1>
    %22 = vector.broadcast %cst : f32 to vector<4x512xf32>
    %23 = arith.select %21, %19, %22 : vector<4x512xi1>, vector<4x512xf32>
    %c16_i32_3 = arith.constant 16 : i32
    %24 = tpu.dynamic_rotate %0 by %c16_i32_3 dim 1 : vector<4x512xf32>, i32 -> vector<4x512xf32>
    %cst_4 = arith.constant 0.000000e+00 : f32
    %25 = vector.shape_cast %7 : vector<1x512xi1> to vector<1x512xi1>
    %26 = vector.broadcast %25 : vector<1x512xi1> to vector<4x512xi1>
    %27 = vector.broadcast %cst_4 : f32 to vector<4x512xf32>
    %28 = arith.select %26, %24, %27 : vector<4x512xi1>, vector<4x512xf32>
    %c15_i32_5 = arith.constant 15 : i32
    %29 = tpu.dynamic_rotate %0 by %c15_i32_5 dim 1 : vector<4x512xf32>, i32 -> vector<4x512xf32>
    %cst_6 = arith.constant 0.000000e+00 : f32
    %30 = vector.shape_cast %15 : vector<1x512xi1> to vector<1x512xi1>
    %31 = vector.broadcast %30 : vector<1x512xi1> to vector<4x512xi1>
    %32 = vector.broadcast %cst_6 : f32 to vector<4x512xf32>
    %33 = arith.select %31, %29, %32 : vector<4x512xi1>, vector<4x512xf32>
    %c1_i32_7 = arith.constant 1 : i32
    %34 = tpu.dynamic_rotate %0 by %c1_i32_7 dim 1 : vector<4x512xf32>, i32 -> vector<4x512xf32>
    %cst_8 = arith.constant 0.000000e+00 : f32
    %35 = vector.shape_cast %11 : vector<1x512xi1> to vector<1x512xi1>
    %36 = vector.broadcast %35 : vector<1x512xi1> to vector<4x512xi1>
    %37 = vector.broadcast %cst_8 : f32 to vector<4x512xf32>
    %38 = arith.select %36, %34, %37 : vector<4x512xi1>, vector<4x512xf32>
    %c511_i32 = arith.constant 511 : i32
    %39 = tpu.dynamic_rotate %0 by %c511_i32 dim 1 : vector<4x512xf32>, i32 -> vector<4x512xf32>
    %cst_9 = arith.constant 0.000000e+00 : f32
    %40 = vector.shape_cast %13 : vector<1x512xi1> to vector<1x512xi1>
    %41 = vector.broadcast %40 : vector<1x512xi1> to vector<4x512xi1>
    %42 = vector.broadcast %cst_9 : f32 to vector<4x512xf32>
    %43 = arith.select %41, %39, %42 : vector<4x512xi1>, vector<4x512xf32>
    %c497_i32 = arith.constant 497 : i32
    %44 = tpu.dynamic_rotate %0 by %c497_i32 dim 1 : vector<4x512xf32>, i32 -> vector<4x512xf32>
    %cst_10 = arith.constant 0.000000e+00 : f32
    %45 = vector.shape_cast %16 : vector<1x512xi1> to vector<1x512xi1>
    %46 = vector.broadcast %45 : vector<1x512xi1> to vector<4x512xi1>
    %47 = vector.broadcast %cst_10 : f32 to vector<4x512xf32>
    %48 = arith.select %46, %44, %47 : vector<4x512xi1>, vector<4x512xf32>
    %c496_i32 = arith.constant 496 : i32
    %49 = tpu.dynamic_rotate %0 by %c496_i32 dim 1 : vector<4x512xf32>, i32 -> vector<4x512xf32>
    %cst_11 = arith.constant 0.000000e+00 : f32
    %50 = vector.shape_cast %9 : vector<1x512xi1> to vector<1x512xi1>
    %51 = vector.broadcast %50 : vector<1x512xi1> to vector<4x512xi1>
    %52 = vector.broadcast %cst_11 : f32 to vector<4x512xf32>
    %53 = arith.select %51, %49, %52 : vector<4x512xi1>, vector<4x512xf32>
    %c495_i32 = arith.constant 495 : i32
    %54 = tpu.dynamic_rotate %0 by %c495_i32 dim 1 : vector<4x512xf32>, i32 -> vector<4x512xf32>
    %cst_12 = arith.constant 0.000000e+00 : f32
    %55 = vector.shape_cast %17 : vector<1x512xi1> to vector<1x512xi1>
    %56 = vector.broadcast %55 : vector<1x512xi1> to vector<4x512xi1>
    %57 = vector.broadcast %cst_12 : f32 to vector<4x512xf32>
    %58 = arith.select %56, %54, %57 : vector<4x512xi1>, vector<4x512xf32>
    %59 = tpu.concatenate %23, %28, %33, %38, %0, %43, %48, %53, %58 in 0 : vector<4x512xf32>, vector<4x512xf32>, vector<4x512xf32>, vector<4x512xf32>, vector<4x512xf32>, vector<4x512xf32>, vector<4x512xf32>, vector<4x512xf32>, vector<4x512xf32> -> vector<36x512xf32>
    %cst_13 = arith.constant dense<0.000000e+00> : vector<4x512xf32>
    %60 = tpu.matmul %18, %59, %cst_13 {dimension_numbers = #tpu.dot_dimension_numbers<[1], [0], [0], [1], [0, 0, 1, 1], [], []>} : vector<4x36xf32>, vector<36x512xf32>, vector<4x512xf32> -> vector<4x512xf32>
    %c0_14 = arith.constant 0 : index
    %c0_15 = arith.constant 0 : index
    %61 = vector.load %arg1[%c0_14, %c0_15] : memref<4x36xf32, #tpu.memory_space<vmem>>, vector<4x36xf32>
    %c17_i32_16 = arith.constant 17 : i32
    %62 = tpu.dynamic_rotate %60 by %c17_i32_16 dim 1 : vector<4x512xf32>, i32 -> vector<4x512xf32>
    %cst_17 = arith.constant 0.000000e+00 : f32
    %63 = vector.shape_cast %14 : vector<1x512xi1> to vector<1x512xi1>
    %64 = vector.broadcast %63 : vector<1x512xi1> to vector<4x512xi1>
    %65 = vector.broadcast %cst_17 : f32 to vector<4x512xf32>
    %66 = arith.select %64, %62, %65 : vector<4x512xi1>, vector<4x512xf32>
    %c16_i32_18 = arith.constant 16 : i32
    %67 = tpu.dynamic_rotate %60 by %c16_i32_18 dim 1 : vector<4x512xf32>, i32 -> vector<4x512xf32>
    %cst_19 = arith.constant 0.000000e+00 : f32
    %68 = vector.shape_cast %7 : vector<1x512xi1> to vector<1x512xi1>
    %69 = vector.broadcast %68 : vector<1x512xi1> to vector<4x512xi1>
    %70 = vector.broadcast %cst_19 : f32 to vector<4x512xf32>
    %71 = arith.select %69, %67, %70 : vector<4x512xi1>, vector<4x512xf32>
    %c15_i32_20 = arith.constant 15 : i32
    %72 = tpu.dynamic_rotate %60 by %c15_i32_20 dim 1 : vector<4x512xf32>, i32 -> vector<4x512xf32>
    %cst_21 = arith.constant 0.000000e+00 : f32
    %73 = vector.shape_cast %15 : vector<1x512xi1> to vector<1x512xi1>
    %74 = vector.broadcast %73 : vector<1x512xi1> to vector<4x512xi1>
    %75 = vector.broadcast %cst_21 : f32 to vector<4x512xf32>
    %76 = arith.select %74, %72, %75 : vector<4x512xi1>, vector<4x512xf32>
    %c1_i32_22 = arith.constant 1 : i32
    %77 = tpu.dynamic_rotate %60 by %c1_i32_22 dim 1 : vector<4x512xf32>, i32 -> vector<4x512xf32>
    %cst_23 = arith.constant 0.000000e+00 : f32
    %78 = vector.shape_cast %11 : vector<1x512xi1> to vector<1x512xi1>
    %79 = vector.broadcast %78 : vector<1x512xi1> to vector<4x512xi1>
    %80 = vector.broadcast %cst_23 : f32 to vector<4x512xf32>
    %81 = arith.select %79, %77, %80 : vector<4x512xi1>, vector<4x512xf32>
    %c511_i32_24 = arith.constant 511 : i32
    %82 = tpu.dynamic_rotate %60 by %c511_i32_24 dim 1 : vector<4x512xf32>, i32 -> vector<4x512xf32>
    %cst_25 = arith.constant 0.000000e+00 : f32
    %83 = vector.shape_cast %13 : vector<1x512xi1> to vector<1x512xi1>
    %84 = vector.broadcast %83 : vector<1x512xi1> to vector<4x512xi1>
    %85 = vector.broadcast %cst_25 : f32 to vector<4x512xf32>
    %86 = arith.select %84, %82, %85 : vector<4x512xi1>, vector<4x512xf32>
    %c497_i32_26 = arith.constant 497 : i32
    %87 = tpu.dynamic_rotate %60 by %c497_i32_26 dim 1 : vector<4x512xf32>, i32 -> vector<4x512xf32>
    %cst_27 = arith.constant 0.000000e+00 : f32
    %88 = vector.shape_cast %16 : vector<1x512xi1> to vector<1x512xi1>
    %89 = vector.broadcast %88 : vector<1x512xi1> to vector<4x512xi1>
    %90 = vector.broadcast %cst_27 : f32 to vector<4x512xf32>
    %91 = arith.select %89, %87, %90 : vector<4x512xi1>, vector<4x512xf32>
    %c496_i32_28 = arith.constant 496 : i32
    %92 = tpu.dynamic_rotate %60 by %c496_i32_28 dim 1 : vector<4x512xf32>, i32 -> vector<4x512xf32>
    %cst_29 = arith.constant 0.000000e+00 : f32
    %93 = vector.shape_cast %9 : vector<1x512xi1> to vector<1x512xi1>
    %94 = vector.broadcast %93 : vector<1x512xi1> to vector<4x512xi1>
    %95 = vector.broadcast %cst_29 : f32 to vector<4x512xf32>
    %96 = arith.select %94, %92, %95 : vector<4x512xi1>, vector<4x512xf32>
    %c495_i32_30 = arith.constant 495 : i32
    %97 = tpu.dynamic_rotate %60 by %c495_i32_30 dim 1 : vector<4x512xf32>, i32 -> vector<4x512xf32>
    %cst_31 = arith.constant 0.000000e+00 : f32
    %98 = vector.shape_cast %17 : vector<1x512xi1> to vector<1x512xi1>
    %99 = vector.broadcast %98 : vector<1x512xi1> to vector<4x512xi1>
    %100 = vector.broadcast %cst_31 : f32 to vector<4x512xf32>
    %101 = arith.select %99, %97, %100 : vector<4x512xi1>, vector<4x512xf32>
    %102 = tpu.concatenate %66, %71, %76, %81, %60, %86, %91, %96, %101 in 0 : vector<4x512xf32>, vector<4x512xf32>, vector<4x512xf32>, vector<4x512xf32>, vector<4x512xf32>, vector<4x512xf32>, vector<4x512xf32>, vector<4x512xf32>, vector<4x512xf32> -> vector<36x512xf32>
    %cst_32 = arith.constant dense<0.000000e+00> : vector<4x512xf32>
    %103 = tpu.matmul %61, %102, %cst_32 {dimension_numbers = #tpu.dot_dimension_numbers<[1], [0], [0], [1], [0, 0, 1, 1], [], []>} : vector<4x36xf32>, vector<36x512xf32>, vector<4x512xf32> -> vector<4x512xf32>
    %c0_33 = arith.constant 0 : index
    %c0_34 = arith.constant 0 : index
    %104 = vector.load %arg2[%c0_33, %c0_34] : memref<4x1xf32, #tpu.memory_space<vmem>>, vector<4x1xf32>
    %105 = vector.broadcast %104 : vector<4x1xf32> to vector<4x512xf32>
    %106 = arith.addf %103, %105 : vector<4x512xf32>
    %107 = arith.addf %60, %106 : vector<4x512xf32>
    %c8_i32 = arith.constant 8 : i32
    %108 = vector.broadcast %c8_i32 : i32 to vector<1x512xi32>
    %109 = arith.shrsi %1, %108 : vector<1x512xi32>
    %110 = tpu.iota {dimensions = array<i32: 0>} : vector<2x512xi32>
    %111 = vector.broadcast %109 : vector<1x512xi32> to vector<2x512xi32>
    %112 = arith.cmpi eq, %110, %111 : vector<2x512xi32>
    %cst_35 = arith.constant 3.906250e-03 : f32
    %cst_36 = arith.constant 0.000000e+00 : f32
    %113 = vector.broadcast %cst_35 : f32 to vector<2x512xf32>
    %114 = vector.broadcast %cst_36 : f32 to vector<2x512xf32>
    %115 = arith.select %112, %113, %114 : vector<2x512xi1>, vector<2x512xf32>
    %cst_37 = arith.constant dense<0.000000e+00> : vector<2x4xf32>
    %116 = tpu.matmul %115, %107, %cst_37 {dimension_numbers = #tpu.dot_dimension_numbers<[1], [1], [0], [0], [0, 0, 1, 0], [], []>} : vector<2x512xf32>, vector<4x512xf32>, vector<2x4xf32> -> vector<2x4xf32>
    %cst_38 = arith.constant dense<0.000000e+00> : vector<2xf32>
    %117 = vector.multi_reduction <add>, %116, %cst_38 [1] : vector<2x4xf32> to vector<2xf32>
    %118 = vector.shape_cast %117 : vector<2xf32> to vector<2x1xf32>
    %cst_39 = arith.constant 4.000000e+00 : f32
    %119 = vector.broadcast %cst_39 : f32 to vector<2x1xf32>
    %120 = arith.divf %118, %119 : vector<2x1xf32>
    %121 = vector.broadcast %120 : vector<2x1xf32> to vector<2x4xf32>
    %122 = arith.subf %116, %121 : vector<2x4xf32>
    %123 = arith.mulf %122, %122 : vector<2x4xf32>
    %cst_40 = arith.constant dense<0.000000e+00> : vector<2xf32>
    %124 = vector.multi_reduction <add>, %123, %cst_40 [1] : vector<2x4xf32> to vector<2xf32>
    %125 = vector.shape_cast %124 : vector<2xf32> to vector<2x1xf32>
    %cst_41 = arith.constant 4.000000e+00 : f32
    %126 = vector.broadcast %cst_41 : f32 to vector<2x1xf32>
    %127 = arith.divf %125, %126 : vector<2x1xf32>
    %128 = vector.broadcast %120 : vector<2x1xf32> to vector<2x4xf32>
    %129 = arith.subf %116, %128 : vector<2x4xf32>
    %cst_42 = arith.constant 9.99999974E-6 : f32
    %130 = vector.broadcast %cst_42 : f32 to vector<2x1xf32>
    %131 = arith.addf %127, %130 : vector<2x1xf32>
    %132 = math.rsqrt %131 : vector<2x1xf32>
    %133 = vector.broadcast %132 : vector<2x1xf32> to vector<2x4xf32>
    %134 = arith.mulf %129, %133 : vector<2x4xf32>
    %c0_43 = arith.constant 0 : index
    %c0_44 = arith.constant 0 : index
    %135 = vector.load %arg3[%c0_43, %c0_44] : memref<1x4xf32, #tpu.memory_space<vmem>>, vector<1x4xf32>
    %136 = vector.broadcast %135 : vector<1x4xf32> to vector<2x4xf32>
    %137 = arith.mulf %134, %136 : vector<2x4xf32>
    %c0_45 = arith.constant 0 : index
    %c0_46 = arith.constant 0 : index
    %138 = vector.load %arg4[%c0_45, %c0_46] : memref<1x4xf32, #tpu.memory_space<vmem>>, vector<1x4xf32>
    %139 = vector.broadcast %138 : vector<1x4xf32> to vector<2x4xf32>
    %140 = arith.addf %137, %139 : vector<2x4xf32>
    %c0_47 = arith.constant 0 : index
    %c0_48 = arith.constant 0 : index
    %141 = vector.load %arg5[%c0_47, %c0_48] : memref<8x4xf32, #tpu.memory_space<vmem>>, vector<8x4xf32>
    %cst_49 = arith.constant dense<0.000000e+00> : vector<2x8xf32>
    %142 = tpu.matmul %140, %141, %cst_49 {dimension_numbers = #tpu.dot_dimension_numbers<[1], [1], [0], [0], [0, 0, 1, 0], [], []>} : vector<2x4xf32>, vector<8x4xf32>, vector<2x8xf32> -> vector<2x8xf32>
    %c0_50 = arith.constant 0 : index
    %c0_51 = arith.constant 0 : index
    %143 = vector.load %arg7[%c0_50, %c0_51] : memref<2x8xf32, #tpu.memory_space<vmem>>, vector<2x8xf32>
    tpu.vector_store %arg7[%c0_50, %c0_51], %142 {strides = array<i32>} : memref<2x8xf32, #tpu.memory_space<vmem>>, vector<2x8xf32>,
    return
  }
}

</mosaic_0001>

<llo_original>
// kernel: geochat_forward.1
$region0: #{geochat_forward.1}
  #allocation0 [shape = 'u32[]', space=smem, size = 0x4, offset = 0x4, fixed_abs, tag = 'smem constant byte address 0x4 - core index']
  #allocation1 [shape = 'u32[72,128]{1,0:T(1,128)}', space=vmem, size = 0x9000, scoped, tag = 'internal scratch']
  %s0 = inlined_call_operand.vmem [shape: f32[4,36], index: 0, kind: input, shape index: {}]
  %s1 = inlined_call_operand.vmem [shape: f32[4,36], index: 1, kind: input, shape index: {}]
  %s2 = inlined_call_operand.vmem [shape: f32[4,1], index: 2, kind: input, shape index: {}]
  %s3 = inlined_call_operand.vmem [shape: f32[1,4], index: 3, kind: input, shape index: {}]
  %s4 = inlined_call_operand.vmem [shape: f32[1,4], index: 4, kind: input, shape index: {}]
  %s5 = inlined_call_operand.vmem [shape: f32[8,4], index: 5, kind: input, shape index: {}]
  %s6 = inlined_call_operand.vmem [shape: f32[4,512], index: 6, kind: input, shape index: {}]
  %s7 = inlined_call_operand.hbm [shape: f32[2,8], index: 7, kind: output, shape index: {}]
  %s8 = sld [smem:[#allocation0]]
  $region38: #{geochat_forward.1} parent=0
    _
  %s10 = ssub.s32 1, %s8
  %s11 = scalar_select 0, %s10, %s8
  $region1: #{geochat_forward.1} parent=0
    #allocation2 [shape = 'u8[1024]{0}', space=vmem, size = 0x400, scoped, tag = 'output window, operand 0, single buffered']
    #allocation3 [shape = 's32[1]{0}', space=sflag, size = 0x4, scoped, tag = 'scoped memory for geochat_forward.1']
    %12 = vsyncpa [#allocation3], 0
    // Predicated region
    $region2: #{geochat_forward.1} parent=1 // pred_check
      _
    $region3: #{geochat_forward.1} parent=1 // pred_check_branch
      %14 = sbr.rel (0) target = $region5
    $region4: #{geochat_forward.1} parent=1 // pred_region
      _
    $region5: #{geochat_forward.1} parent=1 // pred_fallthru
      _
    // Predicated region
    $region6: #{geochat_forward.1} parent=1 // pred_check
      _
    $region7: #{geochat_forward.1} parent=1 // pred_check_branch
      %16 = sbr.rel (0) target = $region9
    $region8: #{geochat_forward.1} parent=1 // pred_region
      _
    $region9: #{geochat_forward.1} parent=1 // pred_fallthru
      _
    // Predicated region
    $region10: #{geochat_forward.1} parent=1 // pred_check
      _
    $region11: #{geochat_forward.1} parent=1 // pred_check_branch
      %18 = sbr.rel (0) target = $region13
    $region12: #{geochat_forward.1} parent=1 // pred_region
      _
    $region13: #{geochat_forward.1} parent=1 // pred_fallthru
      _
    // Predicated region
    $region14: #{geochat_forward.1} parent=1 // pred_check
      _
    $region15: #{geochat_forward.1} parent=1 // pred_check_branch
      %20 = sbr.rel (0) target = $region17
    $region16: #{geochat_forward.1} parent=1 // pred_region
      _
    $region17: #{geochat_forward.1} parent=1 // pred_fallthru
      _
    // Predicated region
    $region18: #{geochat_forward.1} parent=1 // pred_check
      _
    $region19: #{geochat_forward.1} parent=1 // pred_check_branch
      %22 = sbr.rel (0) target = $region21
    $region20: #{geochat_forward.1} parent=1 // pred_region
      _
    $region21: #{geochat_forward.1} parent=1 // pred_fallthru
      _
    // Predicated region
    $region22: #{geochat_forward.1} parent=1 // pred_check
      _
    $region23: #{geochat_forward.1} parent=1 // pred_check_branch
      %24 = sbr.rel (0) target = $region25
    $region24: #{geochat_forward.1} parent=1 // pred_region
      _
    $region25: #{geochat_forward.1} parent=1 // pred_fallthru
      _
    // Predicated region
    $region26: #{geochat_forward.1} parent=1 // pred_check
      _
    $region27: #{geochat_forward.1} parent=1 // pred_check_branch
      %26 = sbr.rel (0) target = $region29
    $region28: #{geochat_forward.1} parent=1 // pred_region
      _
    $region29: #{geochat_forward.1} parent=1 // pred_fallthru
      _
    %v27 = vld [vmem:[%s6] sm:$0xff]
    %v28 = vld [vmem:[%s6 + $0x8] sm:$0xff]
    %v29 = vlaneseq
    %v30 = vand.u32 %v29, 127
    %v31 = vadd.s32 %v30, 128
    %v32 = vadd.s32 %v30, 256
    %v33 = vadd.s32 %v30, 384
    %v34 = vand.u32 %v30, 255
    %v35 = vand.u32 %v31, 255
    %v36 = vand.u32 %v32, 255
    %v37 = vand.u32 %v33, 255
    %v38 = vand.u32 %v30, 15
    %v39 = vand.u32 %v31, 15
    %v40 = vand.u32 %v32, 15
    %v41 = vand.u32 %v33, 15
    %vm42 = vcmp.ge.s32.totalorder %v34, 16
    %vm43 = vcmp.ge.s32.totalorder %v35, 16
    %vm44 = vcmp.ge.s32.totalorder %v36, 16
    %vm45 = vcmp.ge.s32.totalorder %v37, 16
    %vm46 = vcmp.lt.s32.totalorder %v34, 240
    %vm47 = vcmp.lt.s32.totalorder %v35, 240
    %vm48 = vcmp.lt.s32.totalorder %v36, 240
    %vm49 = vcmp.lt.s32.totalorder %v37, 240
    %vm50 = vcmp.ge.s32.totalorder %v38, 1
    %vm51 = vcmp.ge.s32.totalorder %v39, 1
    %vm52 = vcmp.ge.s32.totalorder %v40, 1
    %vm53 = vcmp.ge.s32.totalorder %v41, 1
    %vm54 = vcmp.le.s32.totalorder %v38, 14
    %vm55 = vcmp.le.s32.totalorder %v39, 14
    %vm56 = vcmp.le.s32.totalorder %v40, 14
    %vm57 = vcmp.le.s32.totalorder %v41, 14
    %vm58 = vmand %vm42, %vm50
    %vm59 = vmand %vm43, %vm51
    %vm60 = vmand %vm44, %vm52
    %vm61 = vmand %vm45, %vm53
    %vm62 = vmand %vm42, %vm54
    %vm63 = vmand %vm43, %vm55
    %vm64 = vmand %vm44, %vm56
    %vm65 = vmand %vm45, %vm57
    %vm66 = vmand %vm46, %vm50
    %vm67 = vmand %vm47, %vm51
    %vm68 = vmand %vm48, %vm52
    %vm69 = vmand %vm49, %vm53
    %vm70 = vmand %vm46, %vm54
    %vm71 = vmand %vm47, %vm55
    %vm72 = vmand %vm48, %vm56
    %vm73 = vmand %vm49, %vm57
    %v74 = vld [vmem:[%s0] sm:$0xf]
    %77 = vst [vmem:[#allocation1] ss:$2 sm:$0xff] %v27
    %s78 = scalar_lea.vmem [#allocation1], 16
    %79 = vst [vmem:[%s78] ss:$2 sm:$0xff] %v28
    %v80 = vld.sshfl [vmem:[#allocation1] sm:$0xff pattern:$0x75316420]
    %v81 = vld.sshfl [vmem:[#allocation1 + $0x8] sm:$0xff pattern:$0x75316420]
    %v82 = vld.sshfl [vmem:[#allocation1 + $0x10] sm:$0xff pattern:$0x75316420]
    %v83 = vld.sshfl [vmem:[#allocation1 + $0x18] sm:$0xff pattern:$0x75316420]
    %88 = vrot.lane.b32.xlu0 %v80, 17
    %v89 = vpop.permute.xlu0 %88
    %90 = vrot.lane.b32.xlu0 %v81, 17
    %v91 = vpop.permute.xlu0 %90
    %92 = vrot.lane.b32.xlu0 %v82, 17
    %v93 = vpop.permute.xlu0 %92
    %94 = vrot.lane.b32.xlu0 %v83, 17
    %v95 = vpop.permute.xlu0 %94
    %vm96 = vcmp.lt.s32.totalorder %v30, 17
    %v97 = vsel %vm96, %v93, %v95
    %v98 = vsel %vm96, %v91, %v93
    %v99 = vsel %vm96, %v89, %v91
    %v100 = vsel %vm96, %v95, %v89
    %v101 = vsel %vm58, 1, 0
    %v102 = vsel %vm59, 1, 0
    %v103 = vsel %vm60, 1, 0
    %v104 = vsel %vm61, 1, 0
    %vm105 = vcmp.eq.s32.totalorder %v101, 1
    %vm106 = vcmp.eq.s32.totalorder %v102, 1
    %vm107 = vcmp.eq.s32.totalorder %v103, 1
    %vm108 = vcmp.eq.s32.totalorder %v104, 1
    %v109 = vsel %vm105, %v100, 0.0
    %v110 = vsel %vm106, %v99, 0.0
    %v111 = vsel %vm107, %v98, 0.0
    %v112 = vsel %vm108, %v97, 0.0
    %113 = vst [vmem:[#allocation1] ss:$2 sm:$0xff] %v27
    %s114 = scalar_lea.vmem [#allocation1], 16
    %115 = vst [vmem:[%s114] ss:$2 sm:$0xff] %v28
    %v116 = vld.sshfl [vmem:[#allocation1] sm:$0xff pattern:$0x75316420]
    %v117 = vld.sshfl [vmem:[#allocation1 + $0x8] sm:$0xff pattern:$0x75316420]
    %v118 = vld.sshfl [vmem:[#allocation1 + $0x10] sm:$0xff pattern:$0x75316420]
    %v119 = vld.sshfl [vmem:[#allocation1 + $0x18] sm:$0xff pattern:$0x75316420]
    %124 = vrot.lane.b32.xlu0 %v116, 16
    %v125 = vpop.permute.xlu0 %124
    %126 = vrot.lane.b32.xlu0 %v117, 16
    %v127 = vpop.permute.xlu0 %126
    %128 = vrot.lane.b32.xlu0 %v118, 16
    %v129 = vpop.permute.xlu0 %128
    %130 = vrot.lane.b32.xlu0 %v119, 16
    %v131 = vpop.permute.xlu0 %130
    %vm132 = vcmp.lt.s32.totalorder %v30, 16
    %v133 = vsel %vm132, %v129, %v131
    %v134 = vsel %vm132, %v127, %v129
    %v135 = vsel %vm132, %v125, %v127
    %v136 = vsel %vm132, %v131, %v125
    %v137 = vsel %vm42, 1, 0
    %v138 = vsel %vm43, 1, 0
    %v139 = vsel %vm44, 1, 0
    %v140 = vsel %vm45, 1, 0
    %vm141 = vcmp.eq.s32.totalorder %v137, 1
    %vm142 = vcmp.eq.s32.totalorder %v138, 1
    %vm143 = vcmp.eq.s32.totalorder %v139, 1
    %vm144 = vcmp.eq.s32.totalorder %v140, 1
    %v145 = vsel %vm141, %v136, 0.0
    %v146 = vsel %vm142, %v135, 0.0
    %v147 = vsel %vm143, %v134, 0.0
    %v148 = vsel %vm144, %v133, 0.0
    %149 = vst [vmem:[#allocation1] ss:$2 sm:$0xff] %v27
    %s150 = scalar_lea.vmem [#allocation1], 16
    %151 = vst [vmem:[%s150] ss:$2 sm:$0xff] %v28
    %v152 = vld.sshfl [vmem:[#allocation1] sm:$0xff pattern:$0x75316420]
    %v153 = vld.sshfl [vmem:[#allocation1 + $0x8] sm:$0xff pattern:$0x75316420]
    %v154 = vld.sshfl [vmem:[#allocation1 + $0x10] sm:$0xff pattern:$0x75316420]
    %v155 = vld.sshfl [vmem:[#allocation1 + $0x18] sm:$0xff pattern:$0x75316420]
    %160 = vrot.lane.b32.xlu0 %v152, 15
    %v161 = vpop.permute.xlu0 %160
    %162 = vrot.lane.b32.xlu0 %v153, 15
    %v163 = vpop.permute.xlu0 %162
    %164 = vrot.lane.b32.xlu0 %v154, 15
    %v165 = vpop.permute.xlu0 %164
    %166 = vrot.lane.b32.xlu0 %v155, 15
    %v167 = vpop.permute.xlu0 %166
    %vm168 = vcmp.lt.s32.totalorder %v30, 15
    %v169 = vsel %vm168, %v165, %v167
    %v170 = vsel %vm168, %v163, %v165
    %v171 = vsel %vm168, %v161, %v163
    %v172 = vsel %vm168, %v167, %v161
    %v173 = vsel %vm62, 1, 0
    %v174 = vsel %vm63, 1, 0
    %v175 = vsel %vm64, 1, 0
    %v176 = vsel %vm65, 1, 0
    %vm177 = vcmp.eq.s32.totalorder %v173, 1
    %vm178 = vcmp.eq.s32.totalorder %v174, 1
    %vm179 = vcmp.eq.s32.totalorder %v175, 1
    %vm180 = vcmp.eq.s32.totalorder %v176, 1
    %v181 = vsel %vm177, %v172, 0.0
    %v182 = vsel %vm178, %v171, 0.0
    %v183 = vsel %vm179, %v170, 0.0
    %v184 = vsel %vm180, %v169, 0.0
    %185 = vst [vmem:[#allocation1] ss:$2 sm:$0xff] %v27
    %s186 = scalar_lea.vmem [#allocation1], 16
    %187 = vst [vmem:[%s186] ss:$2 sm:$0xff] %v28
    %v188 = vld.sshfl [vmem:[#allocation1] sm:$0xff pattern:$0x75316420]
    %v189 = vld.sshfl [vmem:[#allocation1 + $0x8] sm:$0xff pattern:$0x75316420]
    %v190 = vld.sshfl [vmem:[#allocation1 + $0x10] sm:$0xff pattern:$0x75316420]
    %v191 = vld.sshfl [vmem:[#allocation1 + $0x18] sm:$0xff pattern:$0x75316420]
    %196 = vrot.lane.b32.xlu0 %v188, 1
    %v197 = vpop.permute.xlu0 %196
    %198 = vrot.lane.b32.xlu0 %v189, 1
    %v199 = vpop.permute.xlu0 %198
    %200 = vrot.lane.b32.xlu0 %v190, 1
    %v201 = vpop.permute.xlu0 %200
    %202 = vrot.lane.b32.xlu0 %v191, 1
    %v203 = vpop.permute.xlu0 %202
    %vm204 = vcmp.lt.s32.totalorder %v30, 1
    %v205 = vsel %vm204, %v201, %v203
    %v206 = vsel %vm204, %v199, %v201
    %v207 = vsel %vm204, %v197, %v199
    %v208 = vsel %vm204, %v203, %v197
    %v209 = vsel %vm50, 1, 0
    %v210 = vsel %vm51, 1, 0
    %v211 = vsel %vm52, 1, 0
    %v212 = vsel %vm53, 1, 0
    %vm213 = vcmp.eq.s32.totalorder %v209, 1
    %vm214 = vcmp.eq.s32.totalorder %v210, 1
    %vm215 = vcmp.eq.s32.totalorder %v211, 1
    %vm216 = vcmp.eq.s32.totalorder %v212, 1
    %v217 = vsel %vm213, %v208, 0.0
    %v218 = vsel %vm214, %v207, 0.0
    %v219 = vsel %vm215, %v206, 0.0
    %v220 = vsel %vm216, %v205, 0.0
    %221 = vst [vmem:[#allocation1] ss:$2 sm:$0xff] %v27
    %s222 = scalar_lea.vmem [#allocation1], 16
    %223 = vst [vmem:[%s222] ss:$2 sm:$0xff] %v28
    %v224 = vld.sshfl [vmem:[#allocation1] sm:$0xff pattern:$0x75316420]
    %v225 = vld.sshfl [vmem:[#allocation1 + $0x8] sm:$0xff pattern:$0x75316420]
    %v226 = vld.sshfl [vmem:[#allocation1 + $0x10] sm:$0xff pattern:$0x75316420]
    %v227 = vld.sshfl [vmem:[#allocation1 + $0x18] sm:$0xff pattern:$0x75316420]
    %232 = vrot.lane.b32.xlu0 %v224, 127
    %v233 = vpop.permute.xlu0 %232
    %234 = vrot.lane.b32.xlu0 %v225, 127
    %v235 = vpop.permute.xlu0 %234
    %236 = vrot.lane.b32.xlu0 %v226, 127
    %v237 = vpop.permute.xlu0 %236
    %238 = vrot.lane.b32.xlu0 %v227, 127
    %v239 = vpop.permute.xlu0 %238
    %vm240 = vcmp.lt.s32.totalorder %v30, 127
    %v241 = vsel %vm240, %v237, %v239
    %v242 = vsel %vm240, %v235, %v237
    %v243 = vsel %vm240, %v233, %v235
    %v244 = vsel %vm240, %v239, %v233
    %v245 = vsel %vm54, 1, 0
    %v246 = vsel %vm55, 1, 0
    %v247 = vsel %vm56, 1, 0
    %v248 = vsel %vm57, 1, 0
    %vm249 = vcmp.eq.s32.totalorder %v245, 1
    %vm250 = vcmp.eq.s32.totalorder %v246, 1
    %vm251 = vcmp.eq.s32.totalorder %v247, 1
    %vm252 = vcmp.eq.s32.totalorder %v248, 1
    %v253 = vsel %vm249, %v243, 0.0
    %v254 = vsel %vm250, %v242, 0.0
    %v255 = vsel %vm251, %v241, 0.0
    %v256 = vsel %vm252, %v244, 0.0
    %257 = vst [vmem:[#allocation1] ss:$2 sm:$0xff] %v27
    %s258 = scalar_lea.vmem [#allocation1], 16
    %259 = vst [vmem:[%s258] ss:$2 sm:$0xff] %v28
    %v260 = vld.sshfl [vmem:[#allocation1] sm:$0xff pattern:$0x75316420]
    %v261 = vld.sshfl [vmem:[#allocation1 + $0x8] sm:$0xff pattern:$0x75316420]
    %v262 = vld.sshfl [vmem:[#allocation1 + $0x10] sm:$0xff pattern:$0x75316420]
    %v263 = vld.sshfl [vmem:[#allocation1 + $0x18] sm:$0xff pattern:$0x75316420]
    %268 = vrot.lane.b32.xlu0 %v260, 113
    %v269 = vpop.permute.xlu0 %268
    %270 = vrot.lane.b32.xlu0 %v261, 113
    %v271 = vpop.permute.xlu0 %270
    %272 = vrot.lane.b32.xlu0 %v262, 113
    %v273 = vpop.permute.xlu0 %272
    %274 = vrot.lane.b32.xlu0 %v263, 113
    %v275 = vpop.permute.xlu0 %274
    %vm276 = vcmp.lt.s32.totalorder %v30, 113
    %v277 = vsel %vm276, %v273, %v275
    %v278 = vsel %vm276, %v271, %v273
    %v279 = vsel %vm276, %v269, %v271
    %v280 = vsel %vm276, %v275, %v269
    %v281 = vsel %vm66, 1, 0
    %v282 = vsel %vm67, 1, 0
    %v283 = vsel %vm68, 1, 0
    %v284 = vsel %vm69, 1, 0
    %vm285 = vcmp.eq.s32.totalorder %v281, 1
    %vm286 = vcmp.eq.s32.totalorder %v282, 1
    %vm287 = vcmp.eq.s32.totalorder %v283, 1
    %vm288 = vcmp.eq.s32.totalorder %v284, 1
    %v289 = vsel %vm285, %v279, 0.0
    %v290 = vsel %vm286, %v278, 0.0
    %v291 = vsel %vm287, %v277, 0.0
    %v292 = vsel %vm288, %v280, 0.0
    %293 = vst [vmem:[#allocation1] ss:$2 sm:$0xff] %v27
    %s294 = scalar_lea.vmem [#allocation1], 16
    %295 = vst [vmem:[%s294] ss:$2 sm:$0xff] %v28
    %v296 = vld.sshfl [vmem:[#allocation1] sm:$0xff pattern:$0x75316420]
    %v297 = vld.sshfl [vmem:[#allocation1 + $0x8] sm:$0xff pattern:$0x75316420]
    %v298 = vld.sshfl [vmem:[#allocation1 + $0x10] sm:$0xff pattern:$0x75316420]
    %v299 = vld.sshfl [vmem:[#allocation1 + $0x18] sm:$0xff pattern:$0x75316420]
    %304 = vrot.lane.b32.xlu0 %v296, 112
    %v305 = vpop.permute.xlu0 %304
    %306 = vrot.lane.b32.xlu0 %v297, 112
    %v307 = vpop.permute.xlu0 %306
    %308 = vrot.lane.b32.xlu0 %v298, 112
    %v309 = vpop.permute.xlu0 %308
    %310 = vrot.lane.b32.xlu0 %v299, 112
    %v311 = vpop.permute.xlu0 %310
    %vm312 = vcmp.lt.s32.totalorder %v30, 112
    %v313 = vsel %vm312, %v309, %v311
    %v314 = vsel %vm312, %v307, %v309
    %v315 = vsel %vm312, %v305, %v307
    %v316 = vsel %vm312, %v311, %v305
    %v317 = vsel %vm46, 1, 0
    %v318 = vsel %vm47, 1, 0
    %v319 = vsel %vm48, 1, 0
    %v320 = vsel %vm49, 1, 0
    %vm321 = vcmp.eq.s32.totalorder %v317, 1
    %vm322 = vcmp.eq.s32.totalorder %v318, 1
    %vm323 = vcmp.eq.s32.totalorder %v319, 1
    %vm324 = vcmp.eq.s32.totalorder %v320, 1
    %v325 = vsel %vm321, %v315, 0.0
    %v326 = vsel %vm322, %v314, 0.0
    %v327 = vsel %vm323, %v313, 0.0
    %v328 = vsel %vm324, %v316, 0.0
    %329 = vst [vmem:[#allocation1] ss:$2 sm:$0xff] %v27
    %s330 = scalar_lea.vmem [#allocation1], 16
    %331 = vst [vmem:[%s330] ss:$2 sm:$0xff] %v28
    %v332 = vld.sshfl [vmem:[#allocation1] sm:$0xff pattern:$0x75316420]
    %v333 = vld.sshfl [vmem:[#allocation1 + $0x8] sm:$0xff pattern:$0x75316420]
    %v334 = vld.sshfl [vmem:[#allocation1 + $0x10] sm:$0xff pattern:$0x75316420]
    %v335 = vld.sshfl [vmem:[#allocation1 + $0x18] sm:$0xff pattern:$0x75316420]
    %340 = vrot.lane.b32.xlu0 %v332, 111
    %v341 = vpop.permute.xlu0 %340
    %342 = vrot.lane.b32.xlu0 %v333, 111
    %v343 = vpop.permute.xlu0 %342
    %344 = vrot.lane.b32.xlu0 %v334, 111
    %v345 = vpop.permute.xlu0 %344
    %346 = vrot.lane.b32.xlu0 %v335, 111
    %v347 = vpop.permute.xlu0 %346
    %vm348 = vcmp.lt.s32.totalorder %v30, 111
    %v349 = vsel %vm348, %v345, %v347
    %v350 = vsel %vm348, %v343, %v345
    %v351 = vsel %vm348, %v341, %v343
    %v352 = vsel %vm348, %v347, %v341
    %v353 = vsel %vm70, 1, 0
    %v354 = vsel %vm71, 1, 0
    %v355 = vsel %vm72, 1, 0
    %v356 = vsel %vm73, 1, 0
    %vm357 = vcmp.eq.s32.totalorder %v353, 1
    %vm358 = vcmp.eq.s32.totalorder %v354, 1
    %vm359 = vcmp.eq.s32.totalorder %v355, 1
    %vm360 = vcmp.eq.s32.totalorder %v356, 1
    %v361 = vsel %vm357, %v351, 0.0
    %v362 = vsel %vm358, %v350, 0.0
    %v363 = vsel %vm359, %v349, 0.0
    %v364 = vsel %vm360, %v352, 0.0
    %v369 = vrot.slane %v145, 4
    %v370 = vrot.slane %v146, 4
    %v371 = vrot.slane %v147, 4
    %v372 = vrot.slane %v148, 4
    %v381 = vrot.slane %v217, 4
    %v382 = vrot.slane %v218, 4
    %v383 = vrot.slane %v219, 4
    %v384 = vrot.slane %v220, 4
    %389 = vst [vmem:[#allocation1] ss:$2 sm:$0xff] %v27
    %s390 = scalar_lea.vmem [#allocation1], 16
    %391 = vst [vmem:[%s390] ss:$2 sm:$0xff] %v28
    %v392 = vld.sshfl [vmem:[#allocation1] sm:$0xff pattern:$0x75316420]
    %v393 = vld.sshfl [vmem:[#allocation1 + $0x8] sm:$0xff pattern:$0x75316420]
    %v394 = vld.sshfl [vmem:[#allocation1 + $0x10] sm:$0xff pattern:$0x75316420]
    %v395 = vld.sshfl [vmem:[#allocation1 + $0x18] sm:$0xff pattern:$0x75316420]
    %v404 = vrot.slane %v253, 4
    %v405 = vrot.slane %v254, 4
    %v406 = vrot.slane %v255, 4
    %v407 = vrot.slane %v256, 4
    %v416 = vrot.slane %v325, 4
    %v417 = vrot.slane %v326, 4
    %v418 = vrot.slane %v327, 4
    %v419 = vrot.slane %v328, 4
    %vm424 = vcmask 1043456
    %v425 = vsel %vm424, %v109, %v369
    %v426 = vsel %vm424, %v110, %v370
    %v427 = vsel %vm424, %v111, %v371
    %v428 = vsel %vm424, %v112, %v372
    %v429 = vsel %vm424, %v181, %v381
    %v430 = vsel %vm424, %v182, %v382
    %v431 = vsel %vm424, %v183, %v383
    %v432 = vsel %vm424, %v184, %v384
    %v433 = vsel %vm424, %v392, %v404
    %v434 = vsel %vm424, %v393, %v405
    %v435 = vsel %vm424, %v394, %v406
    %v436 = vsel %vm424, %v395, %v407
    %v437 = vsel %vm424, %v289, %v416
    %v438 = vsel %vm424, %v290, %v417
    %v439 = vsel %vm424, %v291, %v418
    %v440 = vsel %vm424, %v292, %v419
    %vm441 = vcmask 293888
    %v443 = vsel %vm441, %v74, 0
    %v446 = vsel %vm424, %v361, 0
    %v449 = vsel %vm424, %v362, 0
    %v452 = vsel %vm424, %v363, 0
    %v455 = vsel %vm424, %v364, 0
    %457 = vmatpush.msra.mxu0 0.0
    %458 = vmatpush.msra.mxu0 0.0
    %459 = vmatpush.msra.mxu0 0.0
    %460 = vmatpush.msra.mxu0 0.0
    %461 = vmatpush.msra.mxu0 0.0
    %462 = vmatpush.msra.mxu0 0.0
    %463 = vmatpush.msra.mxu0 0.0
    %464 = vmatpush.msra.mxu0 0.0
    %465 = vmatpush.msra.mxu0 0.0
    %466 = vmatpush.msra.mxu0 0.0
    %467 = vmatpush.msra.mxu0 0.0
    %468 = vmatpush.msra.mxu0 %v446
    %469 = vmatpush.msra.mxu0 %v437
    %470 = vmatpush.msra.mxu0 %v433
    %471 = vmatpush.msra.mxu0 %v429
    %472 = vmatpush.msra.mxu0 %v425
    %473 = vmatmul.f32.gmra.mxu0 %v443
    %v474 = vpop.f32.mrf.mxu0
    %v475 = vadd.f32 0.0, %v474
    %476 = vdwg.mxu0
    %477 = vmatpush.msra.mxu0 0.0
    %478 = vmatpush.msra.mxu0 0.0
    %479 = vmatpush.msra.mxu0 0.0
    %480 = vmatpush.msra.mxu0 0.0
    %481 = vmatpush.msra.mxu0 0.0
    %482 = vmatpush.msra.mxu0 0.0
    %483 = vmatpush.msra.mxu0 0.0
    %484 = vmatpush.msra.mxu0 0.0
    %485 = vmatpush.msra.mxu0 0.0
    %486 = vmatpush.msra.mxu0 0.0
    %487 = vmatpush.msra.mxu0 0.0
    %488 = vmatpush.msra.mxu0 %v449
    %489 = vmatpush.msra.mxu0 %v438
    %490 = vmatpush.msra.mxu0 %v434
    %491 = vmatpush.msra.mxu0 %v430
    %492 = vmatpush.msra.mxu0 %v426
    %493 = vmatmul.f32.gmra.mxu0 %v443
    %v494 = vpop.f32.mrf.mxu0
    %v495 = vadd.f32 0.0, %v494
    %496 = vdwg.mxu0
    %497 = vmatpush.msra.mxu0 0.0
    %498 = vmatpush.msra.mxu0 0.0
    %499 = vmatpush.msra.mxu0 0.0
    %500 = vmatpush.msra.mxu0 0.0
    %501 = vmatpush.msra.mxu0 0.0
    %502 = vmatpush.msra.mxu0 0.0
    %503 = vmatpush.msra.mxu0 0.0
    %504 = vmatpush.msra.mxu0 0.0
    %505 = vmatpush.msra.mxu0 0.0
    %506 = vmatpush.msra.mxu0 0.0
    %507 = vmatpush.msra.mxu0 0.0
    %508 = vmatpush.msra.mxu0 %v452
    %509 = vmatpush.msra.mxu0 %v439
    %510 = vmatpush.msra.mxu0 %v435
    %511 = vmatpush.msra.mxu0 %v431
    %512 = vmatpush.msra.mxu0 %v427
    %513 = vmatmul.f32.gmra.mxu0 %v443
    %v514 = vpop.f32.mrf.mxu0
    %v515 = vadd.f32 0.0, %v514
    %516 = vdwg.mxu0
    %517 = vmatpush.msra.mxu0 0.0
    %518 = vmatpush.msra.mxu0 0.0
    %519 = vmatpush.msra.mxu0 0.0
    %520 = vmatpush.msra.mxu0 0.0
    %521 = vmatpush.msra.mxu0 0.0
    %522 = vmatpush.msra.mxu0 0.0
    %523 = vmatpush.msra.mxu0 0.0
    %524 = vmatpush.msra.mxu0 0.0
    %525 = vmatpush.msra.mxu0 0.0
    %526 = vmatpush.msra.mxu0 0.0
    %527 = vmatpush.msra.mxu0 0.0
    %528 = vmatpush.msra.mxu0 %v455
    %529 = vmatpush.msra.mxu0 %v440
    %530 = vmatpush.msra.mxu0 %v436
    %531 = vmatpush.msra.mxu0 %v432
    %532 = vmatpush.msra.mxu0 %v428
    %533 = vmatmul.f32.gmra.mxu0 %v443
    %v534 = vpop.f32.mrf.mxu0
    %v535 = vadd.f32 0.0, %v534
    %536 = vdwg.mxu0
    %v537 = vld [vmem:[%s1] sm:$0xf]
    %538 = vrot.lane.b32.xlu0 %v475, 17
    %v539 = vpop.permute.xlu0 %538
    %540 = vrot.lane.b32.xlu0 %v495, 17
    %v541 = vpop.permute.xlu0 %540
    %542 = vrot.lane.b32.xlu0 %v515, 17
    %v543 = vpop.permute.xlu0 %542
    %544 = vrot.lane.b32.xlu0 %v535, 17
    %v545 = vpop.permute.xlu0 %544
    %v546 = vsel %vm96, %v543, %v545
    %v547 = vsel %vm96, %v541, %v543
    %v548 = vsel %vm96, %v539, %v541
    %v549 = vsel %vm96, %v545, %v539
    %v550 = vsel %vm105, %v549, 0.0
    %v551 = vsel %vm106, %v548, 0.0
    %v552 = vsel %vm107, %v547, 0.0
    %v553 = vsel %vm108, %v546, 0.0
    %554 = vrot.lane.b32.xlu0 %v475, 16
    %v555 = vpop.permute.xlu0 %554
    %556 = vrot.lane.b32.xlu0 %v495, 16
    %v557 = vpop.permute.xlu0 %556
    %558 = vrot.lane.b32.xlu0 %v515, 16
    %v559 = vpop.permute.xlu0 %558
    %560 = vrot.lane.b32.xlu0 %v535, 16
    %v561 = vpop.permute.xlu0 %560
    %v562 = vsel %vm132, %v559, %v561
    %v563 = vsel %vm132, %v557, %v559
    %v564 = vsel %vm132, %v555, %v557
    %v565 = vsel %vm132, %v561, %v555
    %v566 = vsel %vm141, %v565, 0.0
    %v567 = vsel %vm142, %v564, 0.0
    %v568 = vsel %vm143, %v563, 0.0
    %v569 = vsel %vm144, %v562, 0.0
    %570 = vrot.lane.b32.xlu0 %v475, 15
    %v571 = vpop.permute.xlu0 %570
    %572 = vrot.lane.b32.xlu0 %v495, 15
    %v573 = vpop.permute.xlu0 %572
    %574 = vrot.lane.b32.xlu0 %v515, 15
    %v575 = vpop.permute.xlu0 %574
    %576 = vrot.lane.b32.xlu0 %v535, 15
    %v577 = vpop.permute.xlu0 %576
    %v578 = vsel %vm168, %v575, %v577
    %v579 = vsel %vm168, %v573, %v575
    %v580 = vsel %vm168, %v571, %v573
    %v581 = vsel %vm168, %v577, %v571
    %v582 = vsel %vm177, %v581, 0.0
    %v583 = vsel %vm178, %v580, 0.0
    %v584 = vsel %vm179, %v579, 0.0
    %v585 = vsel %vm180, %v578, 0.0
    %586 = vrot.lane.b32.xlu0 %v475, 1
    %v587 = vpop.permute.xlu0 %586
    %588 = vrot.lane.b32.xlu0 %v495, 1
    %v589 = vpop.permute.xlu0 %588
    %590 = vrot.lane.b32.xlu0 %v515, 1
    %v591 = vpop.permute.xlu0 %590
    %592 = vrot.lane.b32.xlu0 %v535, 1
    %v593 = vpop.permute.xlu0 %592
    %v594 = vsel %vm204, %v591, %v593
    %v595 = vsel %vm204, %v589, %v591
    %v596 = vsel %vm204, %v587, %v589
    %v597 = vsel %vm204, %v593, %v587
    %v598 = vsel %vm213, %v597, 0.0
    %v599 = vsel %vm214, %v596, 0.0
    %v600 = vsel %vm215, %v595, 0.0
    %v601 = vsel %vm216, %v594, 0.0
    %602 = vrot.lane.b32.xlu0 %v475, 127
    %v603 = vpop.permute.xlu0 %602
    %604 = vrot.lane.b32.xlu0 %v495, 127
    %v605 = vpop.permute.xlu0 %604
    %606 = vrot.lane.b32.xlu0 %v515, 127
    %v607 = vpop.permute.xlu0 %606
    %608 = vrot.lane.b32.xlu0 %v535, 127
    %v609 = vpop.permute.xlu0 %608
    %v610 = vsel %vm240, %v607, %v609
    %v611 = vsel %vm240, %v605, %v607
    %v612 = vsel %vm240, %v603, %v605
    %v613 = vsel %vm240, %v609, %v603
    %v614 = vsel %vm249, %v612, 0.0
    %v615 = vsel %vm250, %v611, 0.0
    %v616 = vsel %vm251, %v610, 0.0
    %v617 = vsel %vm252, %v613, 0.0
    %618 = vrot.lane.b32.xlu0 %v475, 113
    %v619 = vpop.permute.xlu0 %618
    %620 = vrot.lane.b32.xlu0 %v495, 113
    %v621 = vpop.permute.xlu0 %620
    %622 = vrot.lane.b32.xlu0 %v515, 113
    %v623 = vpop.permute.xlu0 %622
    %624 = vrot.lane.b32.xlu0 %v535, 113
    %v625 = vpop.permute.xlu0 %624
    %v626 = vsel %vm276, %v623, %v625
    %v627 = vsel %vm276, %v621, %v623
    %v628 = vsel %vm276, %v619, %v621
    %v629 = vsel %vm276, %v625, %v619
    %v630 = vsel %vm285, %v628, 0.0
    %v631 = vsel %vm286, %v627, 0.0
    %v632 = vsel %vm287, %v626, 0.0
    %v633 = vsel %vm288, %v629, 0.0
    %634 = vrot.lane.b32.xlu0 %v475, 112
    %v635 = vpop.permute.xlu0 %634
    %636 = vrot.lane.b32.xlu0 %v495, 112
    %v637 = vpop.permute.xlu0 %636
    %638 = vrot.lane.b32.xlu0 %v515, 112
    %v639 = vpop.permute.xlu0 %638
    %640 = vrot.lane.b32.xlu0 %v535, 112
    %v641 = vpop.permute.xlu0 %640
    %v642 = vsel %vm312, %v639, %v641
    %v643 = vsel %vm312, %v637, %v639
    %v644 = vsel %vm312, %v635, %v637
    %v645 = vsel %vm312, %v641, %v635
    %v646 = vsel %vm321, %v644, 0.0
    %v647 = vsel %vm322, %v643, 0.0
    %v648 = vsel %vm323, %v642, 0.0
    %v649 = vsel %vm324, %v645, 0.0
    %650 = vrot.lane.b32.xlu0 %v475, 111
    %v651 = vpop.permute.xlu0 %650
    %652 = vrot.lane.b32.xlu0 %v495, 111
    %v653 = vpop.permute.xlu0 %652
    %654 = vrot.lane.b32.xlu0 %v515, 111
    %v655 = vpop.permute.xlu0 %654
    %656 = vrot.lane.b32.xlu0 %v535, 111
    %v657 = vpop.permute.xlu0 %656
    %v658 = vsel %vm348, %v655, %v657
    %v659 = vsel %vm348, %v653, %v655
    %v660 = vsel %vm348, %v651, %v653
    %v661 = vsel %vm348, %v657, %v651
    %v662 = vsel %vm357, %v660, 0.0
    %v663 = vsel %vm358, %v659, 0.0
    %v664 = vsel %vm359, %v658, 0.0
    %v665 = vsel %vm360, %v661, 0.0
    %v670 = vrot.slane %v566, 4
    %v671 = vrot.slane %v567, 4
    %v672 = vrot.slane %v568, 4
    %v673 = vrot.slane %v569, 4
    %v682 = vrot.slane %v598, 4
    %v683 = vrot.slane %v599, 4
    %v684 = vrot.slane %v600, 4
    %v685 = vrot.slane %v601, 4
    %v694 = vrot.slane %v614, 4
    %v695 = vrot.slane %v615, 4
    %v696 = vrot.slane %v616, 4
    %v697 = vrot.slane %v617, 4
    %v706 = vrot.slane %v646, 4
    %v707 = vrot.slane %v647, 4
    %v708 = vrot.slane %v648, 4
    %v709 = vrot.slane %v649, 4
    %v714 = vsel %vm424, %v550, %v670
    %v715 = vsel %vm424, %v551, %v671
    %v716 = vsel %vm424, %v552, %v672
    %v717 = vsel %vm424, %v553, %v673
    %v718 = vsel %vm424, %v582, %v682
    %v719 = vsel %vm424, %v583, %v683
    %v720 = vsel %vm424, %v584, %v684
    %v721 = vsel %vm424, %v585, %v685
    %v722 = vsel %vm424, %v475, %v694
    %v723 = vsel %vm424, %v495, %v695
    %v724 = vsel %vm424, %v515, %v696
    %v725 = vsel %vm424, %v535, %v697
    %v726 = vsel %vm424, %v630, %v706
    %v727 = vsel %vm424, %v631, %v707
    %v728 = vsel %vm424, %v632, %v708
    %v729 = vsel %vm424, %v633, %v709
    %v730 = vld [vmem:[%s2] sm:$0xf]
    %732 = vset.pattern.permute.xlu0 0
    %733 = vperm.xlu0 %732, %v730
    %v734 = vpop.permute.xlu0 %733
    %v737 = vsel %vm441, %v537, 0
    %v740 = vsel %vm424, %v662, 0
    %v743 = vsel %vm424, %v663, 0
    %v746 = vsel %vm424, %v664, 0
    %v749 = vsel %vm424, %v665, 0
    %751 = vmatpush.msra.mxu0 0.0
    %752 = vmatpush.msra.mxu0 0.0
    %753 = vmatpush.msra.mxu0 0.0
    %754 = vmatpush.msra.mxu0 0.0
    %755 = vmatpush.msra.mxu0 0.0
    %756 = vmatpush.msra.mxu0 0.0
    %757 = vmatpush.msra.mxu0 0.0
    %758 = vmatpush.msra.mxu0 0.0
    %759 = vmatpush.msra.mxu0 0.0
    %760 = vmatpush.msra.mxu0 0.0
    %761 = vmatpush.msra.mxu0 0.0
    %762 = vmatpush.msra.mxu0 %v740
    %763 = vmatpush.msra.mxu0 %v726
    %764 = vmatpush.msra.mxu0 %v722
    %765 = vmatpush.msra.mxu0 %v718
    %766 = vmatpush.msra.mxu0 %v714
    %767 = vmatmul.f32.gmra.mxu0 %v737
    %v768 = vpop.f32.mrf.mxu0
    %v769 = vadd.f32 %v734, %v768
    %770 = vdwg.mxu0
    %771 = vmatpush.msra.mxu0 0.0
    %772 = vmatpush.msra.mxu0 0.0
    %773 = vmatpush.msra.mxu0 0.0
    %774 = vmatpush.msra.mxu0 0.0
    %775 = vmatpush.msra.mxu0 0.0
    %776 = vmatpush.msra.mxu0 0.0
    %777 = vmatpush.msra.mxu0 0.0
    %778 = vmatpush.msra.mxu0 0.0
    %779 = vmatpush.msra.mxu0 0.0
    %780 = vmatpush.msra.mxu0 0.0
    %781 = vmatpush.msra.mxu0 0.0
    %782 = vmatpush.msra.mxu0 %v743
    %783 = vmatpush.msra.mxu0 %v727
    %784 = vmatpush.msra.mxu0 %v723
    %785 = vmatpush.msra.mxu0 %v719
    %786 = vmatpush.msra.mxu0 %v715
    %787 = vmatmul.f32.gmra.mxu0 %v737
    %v788 = vpop.f32.mrf.mxu0
    %v789 = vadd.f32 %v734, %v788
    %790 = vdwg.mxu0
    %791 = vmatpush.msra.mxu0 0.0
    %792 = vmatpush.msra.mxu0 0.0
    %793 = vmatpush.msra.mxu0 0.0
    %794 = vmatpush.msra.mxu0 0.0
    %795 = vmatpush.msra.mxu0 0.0
    %796 = vmatpush.msra.mxu0 0.0
    %797 = vmatpush.msra.mxu0 0.0
    %798 = vmatpush.msra.mxu0 0.0
    %799 = vmatpush.msra.mxu0 0.0
    %800 = vmatpush.msra.mxu0 0.0
    %801 = vmatpush.msra.mxu0 0.0
    %802 = vmatpush.msra.mxu0 %v746
    %803 = vmatpush.msra.mxu0 %v728
    %804 = vmatpush.msra.mxu0 %v724
    %805 = vmatpush.msra.mxu0 %v720
    %806 = vmatpush.msra.mxu0 %v716
    %807 = vmatmul.f32.gmra.mxu0 %v737
    %v808 = vpop.f32.mrf.mxu0
    %v809 = vadd.f32 %v734, %v808
    %810 = vdwg.mxu0
    %811 = vmatpush.msra.mxu0 0.0
    %812 = vmatpush.msra.mxu0 0.0
    %813 = vmatpush.msra.mxu0 0.0
    %814 = vmatpush.msra.mxu0 0.0
    %815 = vmatpush.msra.mxu0 0.0
    %816 = vmatpush.msra.mxu0 0.0
    %817 = vmatpush.msra.mxu0 0.0
    %818 = vmatpush.msra.mxu0 0.0
    %819 = vmatpush.msra.mxu0 0.0
    %820 = vmatpush.msra.mxu0 0.0
    %821 = vmatpush.msra.mxu0 0.0
    %822 = vmatpush.msra.mxu0 %v749
    %823 = vmatpush.msra.mxu0 %v729
    %824 = vmatpush.msra.mxu0 %v725
    %825 = vmatpush.msra.mxu0 %v721
    %826 = vmatpush.msra.mxu0 %v717
    %827 = vmatmul.f32.gmra.mxu0 %v737
    %v828 = vpop.f32.mrf.mxu0
    %v829 = vadd.f32 %v734, %v828
    %830 = vdwg.mxu0
    %v831 = vadd.f32 %v475, %v769
    %v832 = vadd.f32 %v495, %v789
    %v833 = vadd.f32 %v515, %v809
    %v834 = vadd.f32 %v535, %v829
    %v835 = vshra.s32 %v30, 8
    %v836 = vshra.s32 %v31, 8
    %v837 = vshra.s32 %v32, 8
    %v838 = vshra.s32 %v33, 8
    %v839 = vlaneseq
    %v840 = vshrl.u32 %v839, 7
    %vm841 = vcmp.eq.s32.totalorder %v840, %v835
    %vm842 = vcmp.eq.s32.totalorder %v840, %v836
    %vm843 = vcmp.eq.s32.totalorder %v840, %v837
    %vm844 = vcmp.eq.s32.totalorder %v840, %v838
    %v845 = vsel %vm841, 0.00390625, 0.0
    %v846 = vsel %vm842, 0.00390625, 0.0
    %v847 = vsel %vm843, 0.00390625, 0.0
    %v848 = vsel %vm844, 0.00390625, 0.0
    %849 = vmatpush.xpose.msra.mxu0 0.0
    %850 = vmatpush.xpose.msra.mxu0 0.0
    %851 = vmatpush.xpose.msra.mxu0 0.0
    %852 = vmatpush.xpose.msra.mxu0 0.0
    %853 = vmatpush.xpose.msra.mxu0 0.0
    %854 = vmatpush.xpose.msra.mxu0 0.0
    %855 = vmatpush.xpose.msra.mxu0 0.0
    %856 = vmatpush.xpose.msra.mxu0 0.0
    %857 = vmatpush.xpose.msra.mxu0 0.0
    %858 = vmatpush.xpose.msra.mxu0 0.0
    %859 = vmatpush.xpose.msra.mxu0 0.0
    %860 = vmatpush.xpose.msra.mxu0 0.0
    %861 = vmatpush.xpose.msra.mxu0 0.0
    %862 = vmatpush.xpose.msra.mxu0 0.0
    %863 = vmatpush.xpose.msra.mxu0 0.0
    %864 = vmatpush.xpose.msra.mxu0 %v831
    %865 = vmatmul.f32.gmra.mxu0 %v845
    %v866 = vpop.f32.mrf.mxu0
    %v867 = vadd.f32 0.0, %v866
    %868 = vdwg.mxu0
    %869 = vmatpush.xpose.msra.mxu0 0.0
    %870 = vmatpush.xpose.msra.mxu0 0.0
    %871 = vmatpush.xpose.msra.mxu0 0.0
    %872 = vmatpush.xpose.msra.mxu0 0.0
    %873 = vmatpush.xpose.msra.mxu0 0.0
    %874 = vmatpush.xpose.msra.mxu0 0.0
    %875 = vmatpush.xpose.msra.mxu0 0.0
    %876 = vmatpush.xpose.msra.mxu0 0.0
    %877 = vmatpush.xpose.msra.mxu0 0.0
    %878 = vmatpush.xpose.msra.mxu0 0.0
    %879 = vmatpush.xpose.msra.mxu0 0.0
    %880 = vmatpush.xpose.msra.mxu0 0.0
    %881 = vmatpush.xpose.msra.mxu0 0.0
    %882 = vmatpush.xpose.msra.mxu0 0.0
    %883 = vmatpush.xpose.msra.mxu0 0.0
    %884 = vmatpush.xpose.msra.mxu0 %v832
    %885 = vmatmul.f32.gmra.mxu0 %v846
    %v886 = vpop.f32.mrf.mxu0
    %v887 = vadd.f32 %v867, %v886
    %888 = vdwg.mxu0
    %889 = vmatpush.xpose.msra.mxu0 0.0
    %890 = vmatpush.xpose.msra.mxu0 0.0
    %891 = vmatpush.xpose.msra.mxu0 0.0
    %892 = vmatpush.xpose.msra.mxu0 0.0
    %893 = vmatpush.xpose.msra.mxu0 0.0
    %894 = vmatpush.xpose.msra.mxu0 0.0
    %895 = vmatpush.xpose.msra.mxu0 0.0
    %896 = vmatpush.xpose.msra.mxu0 0.0
    %897 = vmatpush.xpose.msra.mxu0 0.0
    %898 = vmatpush.xpose.msra.mxu0 0.0
    %899 = vmatpush.xpose.msra.mxu0 0.0
    %900 = vmatpush.xpose.msra.mxu0 0.0
    %901 = vmatpush.xpose.msra.mxu0 0.0
    %902 = vmatpush.xpose.msra.mxu0 0.0
    %903 = vmatpush.xpose.msra.mxu0 0.0
    %904 = vmatpush.xpose.msra.mxu0 %v833
    %905 = vmatmul.f32.gmra.mxu0 %v847
    %v906 = vpop.f32.mrf.mxu0
    %v907 = vadd.f32 %v887, %v906
    %908 = vdwg.mxu0
    %909 = vmatpush.xpose.msra.mxu0 0.0
    %910 = vmatpush.xpose.msra.mxu0 0.0
    %911 = vmatpush.xpose.msra.mxu0 0.0
    %912 = vmatpush.xpose.msra.mxu0 0.0
    %913 = vmatpush.xpose.msra.mxu0 0.0
    %914 = vmatpush.xpose.msra.mxu0 0.0
    %915 = vmatpush.xpose.msra.mxu0 0.0
    %916 = vmatpush.xpose.msra.mxu0 0.0
    %917 = vmatpush.xpose.msra.mxu0 0.0
    %918 = vmatpush.xpose.msra.mxu0 0.0
    %919 = vmatpush.xpose.msra.mxu0 0.0
    %920 = vmatpush.xpose.msra.mxu0 0.0
    %921 = vmatpush.xpose.msra.mxu0 0.0
    %922 = vmatpush.xpose.msra.mxu0 0.0
    %923 = vmatpush.xpose.msra.mxu0 0.0
    %924 = vmatpush.xpose.msra.mxu0 %v834
    %925 = vmatmul.f32.gmra.mxu0 %v848
    %v926 = vpop.f32.mrf.mxu0
    %v927 = vadd.f32 %v907, %v926
    %928 = vdwg.mxu0
    %vm929 = vcmask 25600
    %v930 = vsel %vm929, %v927, 0.0
    %931 = vadd.xlane.f32.xlu0 %v930
    %v932 = vpop.xlane.xlu0 %931
    %v933 = vrcp.pop 4.0
    %v934 = vmul.f32 4.0, %v933
    %v935 = vsub.f32 1.0, %v934
    %v936 = vmul.f32 %v933, %v935
    %v937 = vadd.f32 %v933, %v936
    %vm938 = vweird.f32 %v933
    %v939 = vsel %vm938, %v933, %v937
    %v940 = vmul.f32 %v932, %v939
    %v941 = vsub.f32 %v927, %v940
    %v942 = vmul.f32 %v941, %v941
    %v943 = vsel %vm929, %v942, 0.0
    %944 = vadd.xlane.f32.xlu0 %v943
    %v945 = vpop.xlane.xlu0 %944
    %v946 = vmul.f32 %v945, %v939
    %v947 = vadd.f32 %v946, 1e-05
    %v948 = vrsqrt.pop %v947
    %v949 = vmul.f32 %v948, %v947
    %v950 = vmul.f32 %v949, %v948
    %v951 = vmul.f32 0.5, %v950
    %v952 = vsub.f32 1.5, %v951
    %v953 = vmul.f32 %v948, %v952
    %vm954 = vweird.f32 %v947
    %vm955 = vweird.f32 %v948
    %vm956 = vmor %vm954, %vm955
    %v957 = vsel %vm956, %v948, %v953
    %v958 = vmul.f32 %v941, %v957
    %v959 = vld [vmem:[%s3] sm:$0x1]
    %v961 = vperm.slane %v959, 0
    %v963 = vmul.f32 %v958, %v961
    %v964 = vld [vmem:[%s4] sm:$0x1]
    %v966 = vperm.slane %v964, 0
    %v968 = vadd.f32 %v963, %v966
    %v969 = vld [vmem:[%s5] sm:$0xff]
    %vm970 = vcmask 31744
    %v972 = vsel %vm970, %v968, 0
    %v975 = vsel %vm970, %v969, 0
    %977 = vmatpush.xpose.msra.mxu0 0.0
    %978 = vmatpush.xpose.msra.mxu0 0.0
    %979 = vmatpush.xpose.msra.mxu0 0.0
    %980 = vmatpush.xpose.msra.mxu0 0.0
    %981 = vmatpush.xpose.msra.mxu0 0.0
    %982 = vmatpush.xpose.msra.mxu0 0.0
    %983 = vmatpush.xpose.msra.mxu0 0.0
    %984 = vmatpush.xpose.msra.mxu0 0.0
    %985 = vmatpush.xpose.msra.mxu0 0.0
    %986 = vmatpush.xpose.msra.mxu0 0.0
    %987 = vmatpush.xpose.msra.mxu0 0.0
    %988 = vmatpush.xpose.msra.mxu0 0.0
    %989 = vmatpush.xpose.msra.mxu0 0.0
    %990 = vmatpush.xpose.msra.mxu0 0.0
    %991 = vmatpush.xpose.msra.mxu0 0.0
    %992 = vmatpush.xpose.msra.mxu0 %v975
    %993 = vmatmul.f32.gmra.mxu0 %v972
    %v994 = vpop.f32.mrf.mxu0
    %v995 = vadd.f32 0.0, %v994
    %996 = vdwg.mxu0
    %vm997 = vcmask 58368
    %998 = vst.msk [vmem:[#allocation2] sm:$0x3] %vm997, %v995
    // Predicated region
    $region30: #{geochat_forward.1} parent=1 // pred_check
      _
    $region31: #{geochat_forward.1} parent=1 // pred_check_branch
      %1000 = sbr.rel (0) target = $region33
    $region32: #{geochat_forward.1} parent=1 // pred_region
      %1002 = vsyncadd [#allocation3], 0
      %s1004 = sshll.u32 [#allocation2], 4
      %s1005 = int_to_ptr.vmem [resolvable:$true] %s1004
      %s1006 = sshll.u32 %s7, 4
      %s1007 = int_to_ptr.hbm [resolvable:$true] %s1006
      %1009 = dma.vmem_to_hbm [thread:$0]  %s1005, 32, %s1007, [#allocation3]
    $region33: #{geochat_forward.1} parent=1 // pred_fallthru
      _
    // Predicated region
    $region34: #{geochat_forward.1} parent=1 // pred_check
      _
    $region35: #{geochat_forward.1} parent=1 // pred_check_branch
      %1011 = sbr.rel (0) target = $region37
    $region36: #{geochat_forward.1} parent=1 // pred_region
      %1013 = dma.done [#allocation3], 32
    $region37: #{geochat_forward.1} parent=1 // pred_fallthru
      _
    %1014 = vsyncpa [#allocation3], 1

</llo_original>
